<compile_context>
chip_gen: v7x
topology: tpu7x:2x2x1
jax: 0.10.0
libtpu: 0.0.40
codegen_flags: <defaults>
</compile_context>

<pallas_src>
import functools

import jax
import jax.numpy as jnp
from jax.experimental import pallas as pl
from jax.experimental.pallas import tpu as pltpu


def _round_up(n, m):
    return ((n + m - 1) // m) * m


def _pad2(a, rows, cols):
    r, c = a.shape
    return jnp.pad(a, ((0, rows - r), (0, cols - c)))


def _dgm_kernel(x_ref, s_ref, wu_ref, wwzgr_ref, wwh_ref, b_ref, o_ref, *, hp):
    # x_ref: (TB, Dp)   wu_ref:    (Dp, 4*Hp)   -> fused Uz|Ug|Ur|Uh
    # s_ref: (TB, Hp)   wwzgr_ref: (Hp, 3*Hp)   -> fused Wz|Wg|Wr
    #                   wwh_ref:   (Hp, Hp)
    # b_ref: (1, 4*Hp)  -> per-gate (U-bias + W-bias), order z|g|r|h, f32
    x = x_ref[...]
    s = s_ref[...]
    s_f32 = s.astype(jnp.float32)

    # Fused x-side matmul (MXU, f32 accumulation) + fused bias add (broadcast).
    u = jnp.dot(x, wu_ref[...], preferred_element_type=jnp.float32) + b_ref[...]
    # Fused s-side matmul for the z/g/r gates.
    v = jnp.dot(s, wwzgr_ref[...], preferred_element_type=jnp.float32)

    # All slice boundaries are multiples of 128 -> lane-tile aligned, no repack.
    pre = u[:, : 3 * hp] + v
    Z = jnp.tanh(pre[:, 0 * hp: 1 * hp])
    G = jnp.tanh(pre[:, 1 * hp: 2 * hp])
    R = jnp.tanh(pre[:, 2 * hp: 3 * hp])

    sr = (s_f32 * R).astype(wwh_ref.dtype)
    H = jnp.tanh(u[:, 3 * hp:] +
                 jnp.dot(sr, wwh_ref[...], preferred_element_type=jnp.float32))

    o_ref[...] = ((1.0 - G) * H + Z * s_f32).astype(o_ref.dtype)


@functools.partial(jax.jit, static_argnames=("matmul_dtype", "tb"))
def dgm_layer(x, s, params, *, matmul_dtype=jnp.float32, tb=512):
    """params: dict name -> (weight [in, out], bias [1, out]) for
    Uz, Ug, Ur, Uh (in=dim) and Wz, Wg, Wr, Wh (in=hidden)."""
    B, dim = x.shape
    hidden = s.shape[1]
    f32 = jnp.float32

    # Lane-dense padding of the feature dims; batch padded to the tile size.
    Hp = _round_up(hidden, 128)
    Dp = _round_up(dim, 128)
    TB = min(tb, _round_up(B, 8))
    op_bytes = jnp.dtype(matmul_dtype).itemsize

    def _vmem_estimate(tb_rows):
        weights = (Dp * 4 * Hp + Hp * 3 * Hp + Hp * Hp) * op_bytes + 4 * Hp * 4
        acts = 2 * tb_rows * (Dp + Hp) * op_bytes            # double-buffered inputs
        outs = 2 * tb_rows * Hp * 4                          # double-buffered output
        scratch = tb_rows * 9 * Hp * 4                       # u, v, gates, temporaries
        return weights + acts + outs + scratch

    # Shrink the batch tile if the footprint would blow VMEM (v7x: 64 MiB physical).
    while TB > 8 and _vmem_estimate(TB) > 48 * (1 << 20):
        TB = max(8, TB // 2)
    Bp = _round_up(B, TB)
    vmem_limit = int(min(56 * (1 << 20),
                         max(32 * (1 << 20),
                             int(1.5 * _vmem_estimate(TB)) + (4 << 20))))

    # ---- Fuse + pad parameters in the wrapper (pure layout work, done by XLA). ----
    def padw(name, rows):
        return _pad2(params[name][0].astype(f32), rows, Hp)

    def padb(bu, bw):
        return _pad2((bu + bw).astype(f32).reshape(1, -1), 1, Hp)

    wu = jnp.concatenate([padw("Uz", Dp), padw("Ug", Dp),
                          padw("Ur", Dp), padw("Uh", Dp)], axis=1)          # (Dp, 4Hp)
    wwzgr = jnp.concatenate([padw("Wz", Hp), padw("Wg", Hp),
                             padw("Wr", Hp)], axis=1)                       # (Hp, 3Hp)
    wwh = padw("Wh", Hp)                                                    # (Hp, Hp)
    b_all = jnp.concatenate([padb(params["Uz"][1], params["Wz"][1]),
                             padb(params["Ug"][1], params["Wg"][1]),
                             padb(params["Ur"][1], params["Wr"][1]),
                             padb(params["Uh"][1], params["Wh"][1])], axis=1)  # (1, 4Hp)

    xp = _pad2(x.astype(f32), Bp, Dp).astype(matmul_dtype)
    sp = _pad2(s.astype(f32), Bp, Hp).astype(matmul_dtype)
    wu = wu.astype(matmul_dtype)
    wwzgr = wwzgr.astype(matmul_dtype)
    wwh = wwh.astype(matmul_dtype)
    # Bias stays f32: it is added after the f32-accumulated matmul.

    grid = (Bp // TB,)
    out = pl.pallas_call(
        functools.partial(_dgm_kernel, hp=Hp),
        out_shape=jax.ShapeDtypeStruct((Bp, Hp), jnp.float32),
        grid=grid,
        in_specs=[
            pl.BlockSpec((TB, Dp), lambda i: (i, 0)),          # x: batch-tiled
            pl.BlockSpec((TB, Hp), lambda i: (i, 0)),          # s: batch-tiled
            pl.BlockSpec((Dp, 4 * Hp), lambda i: (0, 0)),      # fused U weights (resident)
            pl.BlockSpec((Hp, 3 * Hp), lambda i: (0, 0)),      # fused W z/g/r (resident)
            pl.BlockSpec((Hp, Hp), lambda i: (0, 0)),          # Wh (resident)
            pl.BlockSpec((1, 4 * Hp), lambda i: (0, 0)),       # fused biases (resident)
        ],
        out_specs=pl.BlockSpec((TB, Hp), lambda i: (i, 0)),
        compiler_params=pltpu.CompilerParams(
            dimension_semantics=("parallel",),
            vmem_limit_bytes=vmem_limit,
        ),
    )(xp, sp, wu, wwzgr, wwh, b_all)

    return out[:B, :hidden]


# ----------------------------- reference & init -----------------------------

def init_linear(key, in_features, out_features):
    # Deterministic init mimicking torch.nn.Linear (uniform +/- 1/sqrt(in)).
    kw, kb = jax.random.split(key)
    bound = 1.0 / (in_features ** 0.5)
    w = jax.random.uniform(kw, (in_features, out_features), jnp.float32, -bound, bound)
    b = jax.random.uniform(kb, (1, out_features), jnp.float32, -bound, bound)
    return w, b


def make_params(key, dim, hidden):
    names = ["Uz", "Ug", "Ur", "Uh", "Wz", "Wg", "Wr", "Wh"]
    keys = jax.random.split(key, len(names))
    params = {}
    for name, k in zip(names, keys):
        in_f = dim if name.startswith("U") else hidden
        params[name] = init_linear(k, in_f, hidden)
    return params


def dgm_layer_reference(x, s, params):
    def lin(v, wb):
        return v @ wb[0] + wb[1]
    Z = jnp.tanh(lin(x, params["Uz"]) + lin(s, params["Wz"]))
    G = jnp.tanh(lin(x, params["Ug"]) + lin(s, params["Wg"]))
    R = jnp.tanh(lin(x, params["Ur"]) + lin(s, params["Wr"]))
    H = jnp.tanh(lin(x, params["Uh"]) + lin(s * R, params["Wh"]))
    return (1 - G) * H + Z * s


if __name__ == "__main__":
    B, dim, hidden = 8, 16, 32

    key = jax.random.PRNGKey(0)
    kx, ks, kp = jax.random.split(key, 3)
    x = jax.random.normal(kx, (B, dim), jnp.float32)
    s = jax.random.normal(ks, (B, hidden), jnp.float32)
    params = make_params(kp, dim, hidden)

    ref = dgm_layer_reference(x, s, params)

    # f32 path (default) — tight check.
    out = jax.block_until_ready(dgm_layer(x, s, params))
    assert out.shape == (B, hidden)
    assert jnp.allclose(out, ref, atol=1e-4, rtol=1e-4), "f32 mismatch vs reference"

    # bf16 matmul-operand path (recommended on v6e/v7x) — loose check.
    out_bf16 = jax.block_until_ready(
        dgm_layer(x, s, params, matmul_dtype=jnp.bfloat16))
    assert out_bf16.shape == (B, hidden)
    assert jnp.allclose(out_bf16, ref, atol=1e-1, rtol=1e-1), "bf16 mismatch vs reference"

    print("KERNEL_OK")
</pallas_src>

<mosaic_0001>
module attributes {stable_mosaic.version = 11 : i64} {
  func.func @_dgm_kernel(%arg0: i32, %arg1: memref<8x128xf32, #tpu.memory_space<vmem>>, %arg2: memref<8x128xf32, #tpu.memory_space<vmem>>, %arg3: memref<128x512xf32, #tpu.memory_space<vmem>>, %arg4: memref<128x384xf32, #tpu.memory_space<vmem>>, %arg5: memref<128x128xf32, #tpu.memory_space<vmem>>, %arg6: memref<1x512xf32, #tpu.memory_space<vmem>>, %arg7: memref<8x128xf32, #tpu.memory_space<vmem>>) attributes {dimension_semantics = [#tpu.dimension_semantics<parallel>], iteration_bounds = array<i64: 1>, scalar_prefetch = 0 : i64, scratch_operands = 0 : i64, tpu.core_type = #tpu.core_type<tc>, window_params = [{transform_indices = @transform_0, window_bounds = array<i64: 8, 128>}, {transform_indices = @transform_1, window_bounds = array<i64: 8, 128>}, {pipeline_mode = #tpu.pipeline_mode<synchronous>, transform_indices = @transform_2, window_bounds = array<i64: 128, 512>}, {pipeline_mode = #tpu.pipeline_mode<synchronous>, transform_indices = @transform_3, window_bounds = array<i64: 128, 384>}, {pipeline_mode = #tpu.pipeline_mode<synchronous>, transform_indices = @transform_4, window_bounds = array<i64: 128, 128>}, {pipeline_mode = #tpu.pipeline_mode<synchronous>, transform_indices = @transform_5, window_bounds = array<i64: 1, 512>}, {transform_indices = @transform_6, window_bounds = array<i64: 8, 128>}]} {
    %c0 = arith.constant 0 : index
    %c0_0 = arith.constant 0 : index
    %0 = vector.load %arg1[%c0, %c0_0] : memref<8x128xf32, #tpu.memory_space<vmem>>, vector<8x128xf32>
    %c0_1 = arith.constant 0 : index
    %c0_2 = arith.constant 0 : index
    %1 = vector.load %arg2[%c0_1, %c0_2] : memref<8x128xf32, #tpu.memory_space<vmem>>, vector<8x128xf32>
    %c0_3 = arith.constant 0 : index
    %c0_4 = arith.constant 0 : index
    %2 = vector.load %arg3[%c0_3, %c0_4] : memref<128x512xf32, #tpu.memory_space<vmem>>, vector<128x512xf32>
    %cst = arith.constant dense<0.000000e+00> : vector<8x512xf32>
    %3 = tpu.matmul %0, %2, %cst {dimension_numbers = #tpu.dot_dimension_numbers<[1], [0], [0], [1], [0, 0, 1, 1], [], []>} : vector<8x128xf32>, vector<128x512xf32>, vector<8x512xf32> -> vector<8x512xf32>
    %c0_5 = arith.constant 0 : index
    %c0_6 = arith.constant 0 : index
    %4 = vector.load %arg6[%c0_5, %c0_6] : memref<1x512xf32, #tpu.memory_space<vmem>>, vector<1x512xf32>
    %5 = vector.broadcast %4 : vector<1x512xf32> to vector<8x512xf32>
    %6 = arith.addf %3, %5 : vector<8x512xf32>
    %c0_7 = arith.constant 0 : index
    %c0_8 = arith.constant 0 : index
    %7 = vector.load %arg4[%c0_7, %c0_8] : memref<128x384xf32, #tpu.memory_space<vmem>>, vector<128x384xf32>
    %cst_9 = arith.constant dense<0.000000e+00> : vector<8x384xf32>
    %8 = tpu.matmul %1, %7, %cst_9 {dimension_numbers = #tpu.dot_dimension_numbers<[1], [0], [0], [1], [0, 0, 1, 1], [], []>} : vector<8x128xf32>, vector<128x384xf32>, vector<8x384xf32> -> vector<8x384xf32>
    %9 = vector.extract_strided_slice %6 {offsets = [0, 0], sizes = [8, 384], strides = [1, 1]} : vector<8x512xf32> to vector<8x384xf32>
    %10 = arith.addf %9, %8 : vector<8x384xf32>
    %11 = vector.extract_strided_slice %10 {offsets = [0, 0], sizes = [8, 128], strides = [1, 1]} : vector<8x384xf32> to vector<8x128xf32>
    %12 = math.tanh %11 : vector<8x128xf32>
    %13 = vector.extract_strided_slice %10 {offsets = [0, 128], sizes = [8, 128], strides = [1, 1]} : vector<8x384xf32> to vector<8x128xf32>
    %14 = math.tanh %13 : vector<8x128xf32>
    %15 = vector.extract_strided_slice %10 {offsets = [0, 256], sizes = [8, 128], strides = [1, 1]} : vector<8x384xf32> to vector<8x128xf32>
    %16 = math.tanh %15 : vector<8x128xf32>
    %17 = arith.mulf %1, %16 : vector<8x128xf32>
    %18 = vector.extract_strided_slice %6 {offsets = [0, 384], sizes = [8, 128], strides = [1, 1]} : vector<8x512xf32> to vector<8x128xf32>
    %c0_10 = arith.constant 0 : index
    %c0_11 = arith.constant 0 : index
    %19 = vector.load %arg5[%c0_10, %c0_11] : memref<128x128xf32, #tpu.memory_space<vmem>>, vector<128x128xf32>
    %cst_12 = arith.constant dense<0.000000e+00> : vector<8x128xf32>
    %20 = tpu.matmul %17, %19, %cst_12 {dimension_numbers = #tpu.dot_dimension_numbers<[1], [0], [0], [1], [0, 0, 1, 1], [], []>} : vector<8x128xf32>, vector<128x128xf32>, vector<8x128xf32> -> vector<8x128xf32>
    %21 = arith.addf %18, %20 : vector<8x128xf32>
    %22 = math.tanh %21 : vector<8x128xf32>
    %cst_13 = arith.constant 1.000000e+00 : f32
    %23 = vector.broadcast %cst_13 : f32 to vector<8x128xf32>
    %24 = arith.subf %23, %14 : vector<8x128xf32>
    %25 = arith.mulf %24, %22 : vector<8x128xf32>
    %26 = arith.mulf %12, %1 : vector<8x128xf32>
    %27 = arith.addf %25, %26 : vector<8x128xf32>
    %c0_14 = arith.constant 0 : index
    %c0_15 = arith.constant 0 : index
    %28 = vector.load %arg7[%c0_14, %c0_15] : memref<8x128xf32, #tpu.memory_space<vmem>>, vector<8x128xf32>
    tpu.vector_store %arg7[%c0_14, %c0_15], %27 {strides = array<i32>} : memref<8x128xf32, #tpu.memory_space<vmem>>, vector<8x128xf32>,
    return
  }
  func.func @transform_0(%arg0: i32) -> (i32, i32) {
    %c0_i32 = arith.constant 0 : i32
    %c0_i32_0 = arith.constant 0 : i32
    return %arg0, %c0_i32 : i32, i32
  }
  func.func @transform_1(%arg0: i32) -> (i32, i32) {
    %c0_i32 = arith.constant 0 : i32
    %c0_i32_0 = arith.constant 0 : i32
    return %arg0, %c0_i32 : i32, i32
  }
  func.func @transform_2(%arg0: i32) -> (i32, i32) {
    %c0_i32 = arith.constant 0 : i32
    %c0_i32_0 = arith.constant 0 : i32
    %c0_i32_1 = arith.constant 0 : i32
    return %c0_i32, %c0_i32_0 : i32, i32
  }
  func.func @transform_3(%arg0: i32) -> (i32, i32) {
    %c0_i32 = arith.constant 0 : i32
    %c0_i32_0 = arith.constant 0 : i32
    %c0_i32_1 = arith.constant 0 : i32
    return %c0_i32, %c0_i32_0 : i32, i32
  }
  func.func @transform_4(%arg0: i32) -> (i32, i32) {
    %c0_i32 = arith.constant 0 : i32
    %c0_i32_0 = arith.constant 0 : i32
    %c0_i32_1 = arith.constant 0 : i32
    return %c0_i32, %c0_i32_0 : i32, i32
  }
  func.func @transform_5(%arg0: i32) -> (i32, i32) {
    %c0_i32 = arith.constant 0 : i32
    %c0_i32_0 = arith.constant 0 : i32
    %c0_i32_1 = arith.constant 0 : i32
    return %c0_i32, %c0_i32_0 : i32, i32
  }
  func.func @transform_6(%arg0: i32) -> (i32, i32) {
    %c0_i32 = arith.constant 0 : i32
    %c0_i32_0 = arith.constant 0 : i32
    return %arg0, %c0_i32 : i32, i32
  }
}

</mosaic_0001>

<llo_original>
// kernel: dgm_layer.1
$region0: #{dgm_layer.1}
  #allocation0 [shape = 'u32[]', space=smem, size = 0x4, offset = 0x4, fixed_abs, tag = 'smem constant byte address 0x4 - core index']
  #allocation1 [shape = 'u32[144,128]{1,0:T(1,128)}', space=vmem, size = 0x12000, scoped, tag = 'internal scratch']
  %s0 = inlined_call_operand.vmem [shape: f32[8,128], index: 0, kind: input, shape index: {}]
  %s1 = inlined_call_operand.vmem [shape: f32[8,128], index: 1, kind: input, shape index: {}]
  %s2 = inlined_call_operand.vmem [shape: f32[128,512], index: 2, kind: input, shape index: {}]
  %s3 = inlined_call_operand.vmem [shape: f32[128,384], index: 3, kind: input, shape index: {}]
  %s4 = inlined_call_operand.vmem [shape: f32[128,128], index: 4, kind: input, shape index: {}]
  %s5 = inlined_call_operand.vmem [shape: f32[1,512], index: 5, kind: input, shape index: {}]
  %s6 = inlined_call_operand.hbm [shape: f32[8,128], index: 6, kind: output, shape index: {}]
  %s7 = sld [smem:[#allocation0]]
  $region34: #{dgm_layer.1} parent=0
    _
  %s9 = ssub.s32 1, %s7
  %s10 = scalar_select 0, %s9, %s7
  $region1: #{dgm_layer.1} parent=0
    #allocation2 [shape = 'u8[4096]{0}', space=vmem, size = 0x1000, scoped, tag = 'output window, operand 0, single buffered']
    #allocation3 [shape = 's32[1]{0}', space=sflag, size = 0x4, scoped, tag = 'scoped memory for dgm_layer.1']
    %11 = vsyncpa [#allocation3], 0
    // Predicated region
    $region2: #{dgm_layer.1} parent=1 // pred_check
      _
    $region3: #{dgm_layer.1} parent=1 // pred_check_branch
      %13 = sbr.rel (0) target = $region5
    $region4: #{dgm_layer.1} parent=1 // pred_region
      _
    $region5: #{dgm_layer.1} parent=1 // pred_fallthru
      _
    // Predicated region
    $region6: #{dgm_layer.1} parent=1 // pred_check
      _
    $region7: #{dgm_layer.1} parent=1 // pred_check_branch
      %15 = sbr.rel (0) target = $region9
    $region8: #{dgm_layer.1} parent=1 // pred_region
      _
    $region9: #{dgm_layer.1} parent=1 // pred_fallthru
      _
    // Predicated region
    $region10: #{dgm_layer.1} parent=1 // pred_check
      _
    $region11: #{dgm_layer.1} parent=1 // pred_check_branch
      %17 = sbr.rel (0) target = $region13
    $region12: #{dgm_layer.1} parent=1 // pred_region
      _
    $region13: #{dgm_layer.1} parent=1 // pred_fallthru
      _
    // Predicated region
    $region14: #{dgm_layer.1} parent=1 // pred_check
      _
    $region15: #{dgm_layer.1} parent=1 // pred_check_branch
      %19 = sbr.rel (0) target = $region17
    $region16: #{dgm_layer.1} parent=1 // pred_region
      _
    $region17: #{dgm_layer.1} parent=1 // pred_fallthru
      _
    // Predicated region
    $region18: #{dgm_layer.1} parent=1 // pred_check
      _
    $region19: #{dgm_layer.1} parent=1 // pred_check_branch
      %21 = sbr.rel (0) target = $region21
    $region20: #{dgm_layer.1} parent=1 // pred_region
      _
    $region21: #{dgm_layer.1} parent=1 // pred_fallthru
      _
    // Predicated region
    $region22: #{dgm_layer.1} parent=1 // pred_check
      _
    $region23: #{dgm_layer.1} parent=1 // pred_check_branch
      %23 = sbr.rel (0) target = $region25
    $region24: #{dgm_layer.1} parent=1 // pred_region
      _
    $region25: #{dgm_layer.1} parent=1 // pred_fallthru
      _
    %v24 = vld [vmem:[%s0] sm:$0xff]
    %v25 = vld [vmem:[%s1] sm:$0xff]
    %v26 = vld [vmem:[%s2] sm:$0xff]
    %v27 = vld [vmem:[%s2 + $0x8] sm:$0xff]
    %v28 = vld [vmem:[%s2 + $0x10] sm:$0xff]
    %v29 = vld [vmem:[%s2 + $0x18] sm:$0xff]
    %v30 = vld [vmem:[%s2 + $0x20] sm:$0xff]
    %v31 = vld [vmem:[%s2 + $0x28] sm:$0xff]
    %v32 = vld [vmem:[%s2 + $0x30] sm:$0xff]
    %v33 = vld [vmem:[%s2 + $0x38] sm:$0xff]
    %v34 = vld [vmem:[%s2 + $0x40] sm:$0xff]
    %v35 = vld [vmem:[%s2 + $0x48] sm:$0xff]
    %v36 = vld [vmem:[%s2 + $0x50] sm:$0xff]
    %v37 = vld [vmem:[%s2 + $0x58] sm:$0xff]
    %v38 = vld [vmem:[%s2 + $0x60] sm:$0xff]
    %v39 = vld [vmem:[%s2 + $0x68] sm:$0xff]
    %v40 = vld [vmem:[%s2 + $0x70] sm:$0xff]
    %v41 = vld [vmem:[%s2 + $0x78] sm:$0xff]
    %v42 = vld [vmem:[%s2 + $0x80] sm:$0xff]
    %v43 = vld [vmem:[%s2 + $0x88] sm:$0xff]
    %v44 = vld [vmem:[%s2 + $0x90] sm:$0xff]
    %v45 = vld [vmem:[%s2 + $0x98] sm:$0xff]
    %v46 = vld [vmem:[%s2 + $0xa0] sm:$0xff]
    %v47 = vld [vmem:[%s2 + $0xa8] sm:$0xff]
    %v48 = vld [vmem:[%s2 + $0xb0] sm:$0xff]
    %v49 = vld [vmem:[%s2 + $0xb8] sm:$0xff]
    %v50 = vld [vmem:[%s2 + $0xc0] sm:$0xff]
    %v51 = vld [vmem:[%s2 + $0xc8] sm:$0xff]
    %v52 = vld [vmem:[%s2 + $0xd0] sm:$0xff]
    %v53 = vld [vmem:[%s2 + $0xd8] sm:$0xff]
    %v54 = vld [vmem:[%s2 + $0xe0] sm:$0xff]
    %v55 = vld [vmem:[%s2 + $0xe8] sm:$0xff]
    %v56 = vld [vmem:[%s2 + $0xf0] sm:$0xff]
    %v57 = vld [vmem:[%s2 + $0xf8] sm:$0xff]
    %v58 = vld [vmem:[%s2 + $0x100] sm:$0xff]
    %v59 = vld [vmem:[%s2 + $0x108] sm:$0xff]
    %v60 = vld [vmem:[%s2 + $0x110] sm:$0xff]
    %v61 = vld [vmem:[%s2 + $0x118] sm:$0xff]
    %v62 = vld [vmem:[%s2 + $0x120] sm:$0xff]
    %v63 = vld [vmem:[%s2 + $0x128] sm:$0xff]
    %v64 = vld [vmem:[%s2 + $0x130] sm:$0xff]
    %v65 = vld [vmem:[%s2 + $0x138] sm:$0xff]
    %v66 = vld [vmem:[%s2 + $0x140] sm:$0xff]
    %v67 = vld [vmem:[%s2 + $0x148] sm:$0xff]
    %v68 = vld [vmem:[%s2 + $0x150] sm:$0xff]
    %v69 = vld [vmem:[%s2 + $0x158] sm:$0xff]
    %v70 = vld [vmem:[%s2 + $0x160] sm:$0xff]
    %v71 = vld [vmem:[%s2 + $0x168] sm:$0xff]
    %v72 = vld [vmem:[%s2 + $0x170] sm:$0xff]
    %v73 = vld [vmem:[%s2 + $0x178] sm:$0xff]
    %v74 = vld [vmem:[%s2 + $0x180] sm:$0xff]
    %v75 = vld [vmem:[%s2 + $0x188] sm:$0xff]
    %v76 = vld [vmem:[%s2 + $0x190] sm:$0xff]
    %v77 = vld [vmem:[%s2 + $0x198] sm:$0xff]
    %v78 = vld [vmem:[%s2 + $0x1a0] sm:$0xff]
    %v79 = vld [vmem:[%s2 + $0x1a8] sm:$0xff]
    %v80 = vld [vmem:[%s2 + $0x1b0] sm:$0xff]
    %v81 = vld [vmem:[%s2 + $0x1b8] sm:$0xff]
    %v82 = vld [vmem:[%s2 + $0x1c0] sm:$0xff]
    %v83 = vld [vmem:[%s2 + $0x1c8] sm:$0xff]
    %v84 = vld [vmem:[%s2 + $0x1d0] sm:$0xff]
    %v85 = vld [vmem:[%s2 + $0x1d8] sm:$0xff]
    %v86 = vld [vmem:[%s2 + $0x1e0] sm:$0xff]
    %v87 = vld [vmem:[%s2 + $0x1e8] sm:$0xff]
    %v88 = vld [vmem:[%s2 + $0x1f0] sm:$0xff]
    %v89 = vld [vmem:[%s2 + $0x1f8] sm:$0xff]
    %v90 = vld [vmem:[%s5] sm:$0xf]
    %v92 = vlaneseq
    %v93 = vshrl.u32 %v92, 7
    %v94 = vsub.s32 0, %v93
    %v95 = vrot.slane %v90, %v94
    %v96 = vlaneseq
    %v97 = vshrl.u32 %v96, 7
    %v98 = vsub.s32 1, %v97
    %v99 = vrot.slane %v90, %v98
    %v100 = vlaneseq
    %v101 = vshrl.u32 %v100, 7
    %v102 = vsub.s32 2, %v101
    %v103 = vrot.slane %v90, %v102
    %v104 = vlaneseq
    %v105 = vshrl.u32 %v104, 7
    %v106 = vsub.s32 3, %v105
    %v107 = vrot.slane %v90, %v106
    %112 = vmatprep.subr.mxu0 %v27
    %113 = vmatpush1.msra.mxu0 %v26
    %114 = vmatprep.subr.mxu0 %v31
    %115 = vmatpush1.msra.mxu0 %v30
    %116 = vmatprep.subr.mxu0 %v35
    %117 = vmatpush1.msra.mxu0 %v34
    %118 = vmatprep.subr.mxu0 %v39
    %119 = vmatpush1.msra.mxu0 %v38
    %120 = vmatprep.subr.mxu0 %v43
    %121 = vmatpush1.msra.mxu0 %v42
    %122 = vmatprep.subr.mxu0 %v47
    %123 = vmatpush1.msra.mxu0 %v46
    %124 = vmatprep.subr.mxu0 %v51
    %125 = vmatpush1.msra.mxu0 %v50
    %126 = vmatprep.subr.mxu0 %v55
    %127 = vmatpush1.msra.mxu0 %v54
    %128 = vmatprep.subr.mxu0 %v59
    %129 = vmatpush1.msra.mxu0 %v58
    %130 = vmatprep.subr.mxu0 %v63
    %131 = vmatpush1.msra.mxu0 %v62
    %132 = vmatprep.subr.mxu0 %v67
    %133 = vmatpush1.msra.mxu0 %v66
    %134 = vmatprep.subr.mxu0 %v71
    %135 = vmatpush1.msra.mxu0 %v70
    %136 = vmatprep.subr.mxu0 %v75
    %137 = vmatpush1.msra.mxu0 %v74
    %138 = vmatprep.subr.mxu0 %v79
    %139 = vmatpush1.msra.mxu0 %v78
    %140 = vmatprep.subr.mxu0 %v83
    %141 = vmatpush1.msra.mxu0 %v82
    %142 = vmatprep.subr.mxu0 %v87
    %143 = vmatpush1.msra.mxu0 %v86
    %144 = vmatprep.subr.mxu0 0.0
    %145 = vmatpush1.msra.mxu0 0.0
    %146 = vmatprep.subr.mxu0 0.0
    %147 = vmatpush1.msra.mxu0 0.0
    %148 = vmatprep.subr.mxu0 0.0
    %149 = vmatpush1.msra.mxu0 0.0
    %150 = vmatprep.subr.mxu0 0.0
    %151 = vmatpush1.msra.mxu0 0.0
    %152 = vmatprep.subr.mxu0 0.0
    %153 = vmatpush1.msra.mxu0 0.0
    %154 = vmatprep.subr.mxu0 0.0
    %155 = vmatpush1.msra.mxu0 0.0
    %156 = vmatprep.subr.mxu0 0.0
    %157 = vmatpush1.msra.mxu0 0.0
    %158 = vmatprep.subr.mxu0 0.0
    %159 = vmatpush1.msra.mxu0 0.0
    %160 = vmatprep.subr.mxu0 0.0
    %161 = vmatpush1.msra.mxu0 0.0
    %162 = vmatprep.subr.mxu0 0.0
    %163 = vmatpush1.msra.mxu0 0.0
    %164 = vmatprep.subr.mxu0 0.0
    %165 = vmatpush1.msra.mxu0 0.0
    %166 = vmatprep.subr.mxu0 0.0
    %167 = vmatpush1.msra.mxu0 0.0
    %168 = vmatprep.subr.mxu0 0.0
    %169 = vmatpush1.msra.mxu0 0.0
    %170 = vmatprep.subr.mxu0 0.0
    %171 = vmatpush1.msra.mxu0 0.0
    %172 = vmatprep.subr.mxu0 0.0
    %173 = vmatpush1.msra.mxu0 0.0
    %174 = vmatprep.subr.mxu0 0.0
    %175 = vmatpush1.msra.mxu0 0.0
    %176 = vmatprep.mubr.f32.mxu0 0.0
    %177 = vmatmul.mubr.f32.gmra.mrb[0].mxu0 %v24
    %v178 = vpop.f32.mrb[0].mxu0
    %v179 = vadd.f32 %v95, %v178
    %v180 = vpop.f32.mrb[0].mxu0
    %v181 = vadd.f32 %v99, %v180
    %182 = vdwg.mxu0
    %183 = vmatprep.subr.mxu0 %v29
    %184 = vmatpush1.msra.mxu0 %v28
    %185 = vmatprep.subr.mxu0 %v33
    %186 = vmatpush1.msra.mxu0 %v32
    %187 = vmatprep.subr.mxu0 %v37
    %188 = vmatpush1.msra.mxu0 %v36
    %189 = vmatprep.subr.mxu0 %v41
    %190 = vmatpush1.msra.mxu0 %v40
    %191 = vmatprep.subr.mxu0 %v45
    %192 = vmatpush1.msra.mxu0 %v44
    %193 = vmatprep.subr.mxu0 %v49
    %194 = vmatpush1.msra.mxu0 %v48
    %195 = vmatprep.subr.mxu0 %v53
    %196 = vmatpush1.msra.mxu0 %v52
    %197 = vmatprep.subr.mxu0 %v57
    %198 = vmatpush1.msra.mxu0 %v56
    %199 = vmatprep.subr.mxu0 %v61
    %200 = vmatpush1.msra.mxu0 %v60
    %201 = vmatprep.subr.mxu0 %v65
    %202 = vmatpush1.msra.mxu0 %v64
    %203 = vmatprep.subr.mxu0 %v69
    %204 = vmatpush1.msra.mxu0 %v68
    %205 = vmatprep.subr.mxu0 %v73
    %206 = vmatpush1.msra.mxu0 %v72
    %207 = vmatprep.subr.mxu0 %v77
    %208 = vmatpush1.msra.mxu0 %v76
    %209 = vmatprep.subr.mxu0 %v81
    %210 = vmatpush1.msra.mxu0 %v80
    %211 = vmatprep.subr.mxu0 %v85
    %212 = vmatpush1.msra.mxu0 %v84
    %213 = vmatprep.subr.mxu0 %v89
    %214 = vmatpush1.msra.mxu0 %v88
    %215 = vmatprep.subr.mxu0 0.0
    %216 = vmatpush1.msra.mxu0 0.0
    %217 = vmatprep.subr.mxu0 0.0
    %218 = vmatpush1.msra.mxu0 0.0
    %219 = vmatprep.subr.mxu0 0.0
    %220 = vmatpush1.msra.mxu0 0.0
    %221 = vmatprep.subr.mxu0 0.0
    %222 = vmatpush1.msra.mxu0 0.0
    %223 = vmatprep.subr.mxu0 0.0
    %224 = vmatpush1.msra.mxu0 0.0
    %225 = vmatprep.subr.mxu0 0.0
    %226 = vmatpush1.msra.mxu0 0.0
    %227 = vmatprep.subr.mxu0 0.0
    %228 = vmatpush1.msra.mxu0 0.0
    %229 = vmatprep.subr.mxu0 0.0
    %230 = vmatpush1.msra.mxu0 0.0
    %231 = vmatprep.subr.mxu0 0.0
    %232 = vmatpush1.msra.mxu0 0.0
    %233 = vmatprep.subr.mxu0 0.0
    %234 = vmatpush1.msra.mxu0 0.0
    %235 = vmatprep.subr.mxu0 0.0
    %236 = vmatpush1.msra.mxu0 0.0
    %237 = vmatprep.subr.mxu0 0.0
    %238 = vmatpush1.msra.mxu0 0.0
    %239 = vmatprep.subr.mxu0 0.0
    %240 = vmatpush1.msra.mxu0 0.0
    %241 = vmatprep.subr.mxu0 0.0
    %242 = vmatpush1.msra.mxu0 0.0
    %243 = vmatprep.subr.mxu0 0.0
    %244 = vmatpush1.msra.mxu0 0.0
    %245 = vmatprep.subr.mxu0 0.0
    %246 = vmatpush1.msra.mxu0 0.0
    %247 = vmatprep.mubr.f32.mxu0 0.0
    %248 = vmatmul.mubr.f32.gmra.mrb[0].mxu0 %v24
    %v249 = vpop.f32.mrb[0].mxu0
    %v250 = vadd.f32 %v103, %v249
    %v251 = vpop.f32.mrb[0].mxu0
    %v252 = vadd.f32 %v107, %v251
    %253 = vdwg.mxu0
    %v254 = vld [vmem:[%s3] sm:$0xff]
    %v255 = vld [vmem:[%s3 + $0x8] sm:$0xff]
    %v256 = vld [vmem:[%s3 + $0x10] sm:$0xff]
    %v257 = vld [vmem:[%s3 + $0x18] sm:$0xff]
    %v258 = vld [vmem:[%s3 + $0x20] sm:$0xff]
    %v259 = vld [vmem:[%s3 + $0x28] sm:$0xff]
    %v260 = vld [vmem:[%s3 + $0x30] sm:$0xff]
    %v261 = vld [vmem:[%s3 + $0x38] sm:$0xff]
    %v262 = vld [vmem:[%s3 + $0x40] sm:$0xff]
    %v263 = vld [vmem:[%s3 + $0x48] sm:$0xff]
    %v264 = vld [vmem:[%s3 + $0x50] sm:$0xff]
    %v265 = vld [vmem:[%s3 + $0x58] sm:$0xff]
    %v266 = vld [vmem:[%s3 + $0x60] sm:$0xff]
    %v267 = vld [vmem:[%s3 + $0x68] sm:$0xff]
    %v268 = vld [vmem:[%s3 + $0x70] sm:$0xff]
    %v269 = vld [vmem:[%s3 + $0x78] sm:$0xff]
    %v270 = vld [vmem:[%s3 + $0x80] sm:$0xff]
    %v271 = vld [vmem:[%s3 + $0x88] sm:$0xff]
    %v272 = vld [vmem:[%s3 + $0x90] sm:$0xff]
    %v273 = vld [vmem:[%s3 + $0x98] sm:$0xff]
    %v274 = vld [vmem:[%s3 + $0xa0] sm:$0xff]
    %v275 = vld [vmem:[%s3 + $0xa8] sm:$0xff]
    %v276 = vld [vmem:[%s3 + $0xb0] sm:$0xff]
    %v277 = vld [vmem:[%s3 + $0xb8] sm:$0xff]
    %v278 = vld [vmem:[%s3 + $0xc0] sm:$0xff]
    %v279 = vld [vmem:[%s3 + $0xc8] sm:$0xff]
    %v280 = vld [vmem:[%s3 + $0xd0] sm:$0xff]
    %v281 = vld [vmem:[%s3 + $0xd8] sm:$0xff]
    %v282 = vld [vmem:[%s3 + $0xe0] sm:$0xff]
    %v283 = vld [vmem:[%s3 + $0xe8] sm:$0xff]
    %v284 = vld [vmem:[%s3 + $0xf0] sm:$0xff]
    %v285 = vld [vmem:[%s3 + $0xf8] sm:$0xff]
    %v286 = vld [vmem:[%s3 + $0x100] sm:$0xff]
    %v287 = vld [vmem:[%s3 + $0x108] sm:$0xff]
    %v288 = vld [vmem:[%s3 + $0x110] sm:$0xff]
    %v289 = vld [vmem:[%s3 + $0x118] sm:$0xff]
    %v290 = vld [vmem:[%s3 + $0x120] sm:$0xff]
    %v291 = vld [vmem:[%s3 + $0x128] sm:$0xff]
    %v292 = vld [vmem:[%s3 + $0x130] sm:$0xff]
    %v293 = vld [vmem:[%s3 + $0x138] sm:$0xff]
    %v294 = vld [vmem:[%s3 + $0x140] sm:$0xff]
    %v295 = vld [vmem:[%s3 + $0x148] sm:$0xff]
    %v296 = vld [vmem:[%s3 + $0x150] sm:$0xff]
    %v297 = vld [vmem:[%s3 + $0x158] sm:$0xff]
    %v298 = vld [vmem:[%s3 + $0x160] sm:$0xff]
    %v299 = vld [vmem:[%s3 + $0x168] sm:$0xff]
    %v300 = vld [vmem:[%s3 + $0x170] sm:$0xff]
    %v301 = vld [vmem:[%s3 + $0x178] sm:$0xff]
    %302 = vmatprep.subr.mxu0 %v255
    %303 = vmatpush1.msra.mxu0 %v254
    %304 = vmatprep.subr.mxu0 %v258
    %305 = vmatpush1.msra.mxu0 %v257
    %306 = vmatprep.subr.mxu0 %v261
    %307 = vmatpush1.msra.mxu0 %v260
    %308 = vmatprep.subr.mxu0 %v264
    %309 = vmatpush1.msra.mxu0 %v263
    %310 = vmatprep.subr.mxu0 %v267
    %311 = vmatpush1.msra.mxu0 %v266
    %312 = vmatprep.subr.mxu0 %v270
    %313 = vmatpush1.msra.mxu0 %v269
    %314 = vmatprep.subr.mxu0 %v273
    %315 = vmatpush1.msra.mxu0 %v272
    %316 = vmatprep.subr.mxu0 %v276
    %317 = vmatpush1.msra.mxu0 %v275
    %318 = vmatprep.subr.mxu0 %v279
    %319 = vmatpush1.msra.mxu0 %v278
    %320 = vmatprep.subr.mxu0 %v282
    %321 = vmatpush1.msra.mxu0 %v281
    %322 = vmatprep.subr.mxu0 %v285
    %323 = vmatpush1.msra.mxu0 %v284
    %324 = vmatprep.subr.mxu0 %v288
    %325 = vmatpush1.msra.mxu0 %v287
    %326 = vmatprep.subr.mxu0 %v291
    %327 = vmatpush1.msra.mxu0 %v290
    %328 = vmatprep.subr.mxu0 %v294
    %329 = vmatpush1.msra.mxu0 %v293
    %330 = vmatprep.subr.mxu0 %v297
    %331 = vmatpush1.msra.mxu0 %v296
    %332 = vmatprep.subr.mxu0 %v300
    %333 = vmatpush1.msra.mxu0 %v299
    %334 = vmatprep.subr.mxu0 0.0
    %335 = vmatpush1.msra.mxu0 0.0
    %336 = vmatprep.subr.mxu0 0.0
    %337 = vmatpush1.msra.mxu0 0.0
    %338 = vmatprep.subr.mxu0 0.0
    %339 = vmatpush1.msra.mxu0 0.0
    %340 = vmatprep.subr.mxu0 0.0
    %341 = vmatpush1.msra.mxu0 0.0
    %342 = vmatprep.subr.mxu0 0.0
    %343 = vmatpush1.msra.mxu0 0.0
    %344 = vmatprep.subr.mxu0 0.0
    %345 = vmatpush1.msra.mxu0 0.0
    %346 = vmatprep.subr.mxu0 0.0
    %347 = vmatpush1.msra.mxu0 0.0
    %348 = vmatprep.subr.mxu0 0.0
    %349 = vmatpush1.msra.mxu0 0.0
    %350 = vmatprep.subr.mxu0 0.0
    %351 = vmatpush1.msra.mxu0 0.0
    %352 = vmatprep.subr.mxu0 0.0
    %353 = vmatpush1.msra.mxu0 0.0
    %354 = vmatprep.subr.mxu0 0.0
    %355 = vmatpush1.msra.mxu0 0.0
    %356 = vmatprep.subr.mxu0 0.0
    %357 = vmatpush1.msra.mxu0 0.0
    %358 = vmatprep.subr.mxu0 0.0
    %359 = vmatpush1.msra.mxu0 0.0
    %360 = vmatprep.subr.mxu0 0.0
    %361 = vmatpush1.msra.mxu0 0.0
    %362 = vmatprep.subr.mxu0 0.0
    %363 = vmatpush1.msra.mxu0 0.0
    %364 = vmatprep.subr.mxu0 0.0
    %365 = vmatpush1.msra.mxu0 0.0
    %366 = vmatprep.mubr.f32.mxu0 0.0
    %367 = vmatmul.mubr.f32.gmra.mrb[0].mxu0 %v25
    %v368 = vpop.f32.mrb[0].mxu0
    %v369 = vadd.f32 0.0, %v368
    %v370 = vpop.f32.mrb[0].mxu0
    %v371 = vadd.f32 0.0, %v370
    %372 = vdwg.mxu0
    %373 = vmatprep.subr.mxu0 0.0
    %374 = vmatpush1.msra.mxu0 %v256
    %375 = vmatprep.subr.mxu0 0.0
    %376 = vmatpush1.msra.mxu0 %v259
    %377 = vmatprep.subr.mxu0 0.0
    %378 = vmatpush1.msra.mxu0 %v262
    %379 = vmatprep.subr.mxu0 0.0
    %380 = vmatpush1.msra.mxu0 %v265
    %381 = vmatprep.subr.mxu0 0.0
    %382 = vmatpush1.msra.mxu0 %v268
    %383 = vmatprep.subr.mxu0 0.0
    %384 = vmatpush1.msra.mxu0 %v271
    %385 = vmatprep.subr.mxu0 0.0
    %386 = vmatpush1.msra.mxu0 %v274
    %387 = vmatprep.subr.mxu0 0.0
    %388 = vmatpush1.msra.mxu0 %v277
    %389 = vmatprep.subr.mxu0 0.0
    %390 = vmatpush1.msra.mxu0 %v280
    %391 = vmatprep.subr.mxu0 0.0
    %392 = vmatpush1.msra.mxu0 %v283
    %393 = vmatprep.subr.mxu0 0.0
    %394 = vmatpush1.msra.mxu0 %v286
    %395 = vmatprep.subr.mxu0 0.0
    %396 = vmatpush1.msra.mxu0 %v289
    %397 = vmatprep.subr.mxu0 0.0
    %398 = vmatpush1.msra.mxu0 %v292
    %399 = vmatprep.subr.mxu0 0.0
    %400 = vmatpush1.msra.mxu0 %v295
    %401 = vmatprep.subr.mxu0 0.0
    %402 = vmatpush1.msra.mxu0 %v298
    %403 = vmatprep.subr.mxu0 0.0
    %404 = vmatpush1.msra.mxu0 %v301
    %405 = vmatprep.subr.mxu0 0.0
    %406 = vmatpush1.msra.mxu0 0.0
    %407 = vmatprep.subr.mxu0 0.0
    %408 = vmatpush1.msra.mxu0 0.0
    %409 = vmatprep.subr.mxu0 0.0
    %410 = vmatpush1.msra.mxu0 0.0
    %411 = vmatprep.subr.mxu0 0.0
    %412 = vmatpush1.msra.mxu0 0.0
    %413 = vmatprep.subr.mxu0 0.0
    %414 = vmatpush1.msra.mxu0 0.0
    %415 = vmatprep.subr.mxu0 0.0
    %416 = vmatpush1.msra.mxu0 0.0
    %417 = vmatprep.subr.mxu0 0.0
    %418 = vmatpush1.msra.mxu0 0.0
    %419 = vmatprep.subr.mxu0 0.0
    %420 = vmatpush1.msra.mxu0 0.0
    %421 = vmatprep.subr.mxu0 0.0
    %422 = vmatpush1.msra.mxu0 0.0
    %423 = vmatprep.subr.mxu0 0.0
    %424 = vmatpush1.msra.mxu0 0.0
    %425 = vmatprep.subr.mxu0 0.0
    %426 = vmatpush1.msra.mxu0 0.0
    %427 = vmatprep.subr.mxu0 0.0
    %428 = vmatpush1.msra.mxu0 0.0
    %429 = vmatprep.subr.mxu0 0.0
    %430 = vmatpush1.msra.mxu0 0.0
    %431 = vmatprep.subr.mxu0 0.0
    %432 = vmatpush1.msra.mxu0 0.0
    %433 = vmatprep.subr.mxu0 0.0
    %434 = vmatpush1.msra.mxu0 0.0
    %435 = vmatprep.subr.mxu0 0.0
    %436 = vmatpush1.msra.mxu0 0.0
    %437 = vmatprep.mubr.f32.mxu0 0.0
    %438 = vmatmul.mubr.f32.gmra.mrb[0].mxu0 %v25
    %v439 = vpop.f32.mrb[0].mxu0
    %v440 = vadd.f32 0.0, %v439
    %v441 = vpop.f32.mrb[0].mxu0
    %442 = vdwg.mxu0
    %v443 = vadd.f32 %v179, %v369
    %v444 = vadd.f32 %v181, %v371
    %v445 = vadd.f32 %v250, %v440
    %v446 = vtanh.pop %v443
    %v447 = vtanh.pop %v444
    %v448 = vtanh.pop %v445
    %v449 = vmul.f32 %v25, %v448
    %v450 = vld [vmem:[%s4] sm:$0xff]
    %v451 = vld [vmem:[%s4 + $0x8] sm:$0xff]
    %v452 = vld [vmem:[%s4 + $0x10] sm:$0xff]
    %v453 = vld [vmem:[%s4 + $0x18] sm:$0xff]
    %v454 = vld [vmem:[%s4 + $0x20] sm:$0xff]
    %v455 = vld [vmem:[%s4 + $0x28] sm:$0xff]
    %v456 = vld [vmem:[%s4 + $0x30] sm:$0xff]
    %v457 = vld [vmem:[%s4 + $0x38] sm:$0xff]
    %v458 = vld [vmem:[%s4 + $0x40] sm:$0xff]
    %v459 = vld [vmem:[%s4 + $0x48] sm:$0xff]
    %v460 = vld [vmem:[%s4 + $0x50] sm:$0xff]
    %v461 = vld [vmem:[%s4 + $0x58] sm:$0xff]
    %v462 = vld [vmem:[%s4 + $0x60] sm:$0xff]
    %v463 = vld [vmem:[%s4 + $0x68] sm:$0xff]
    %v464 = vld [vmem:[%s4 + $0x70] sm:$0xff]
    %v465 = vld [vmem:[%s4 + $0x78] sm:$0xff]
    %466 = vmatprep.subr.mxu0 0.0
    %467 = vmatpush1.msra.mxu0 %v450
    %468 = vmatprep.subr.mxu0 0.0
    %469 = vmatpush1.msra.mxu0 %v451
    %470 = vmatprep.subr.mxu0 0.0
    %471 = vmatpush1.msra.mxu0 %v452
    %472 = vmatprep.subr.mxu0 0.0
    %473 = vmatpush1.msra.mxu0 %v453
    %474 = vmatprep.subr.mxu0 0.0
    %475 = vmatpush1.msra.mxu0 %v454
    %476 = vmatprep.subr.mxu0 0.0
    %477 = vmatpush1.msra.mxu0 %v455
    %478 = vmatprep.subr.mxu0 0.0
    %479 = vmatpush1.msra.mxu0 %v456
    %480 = vmatprep.subr.mxu0 0.0
    %481 = vmatpush1.msra.mxu0 %v457
    %482 = vmatprep.subr.mxu0 0.0
    %483 = vmatpush1.msra.mxu0 %v458
    %484 = vmatprep.subr.mxu0 0.0
    %485 = vmatpush1.msra.mxu0 %v459
    %486 = vmatprep.subr.mxu0 0.0
    %487 = vmatpush1.msra.mxu0 %v460
    %488 = vmatprep.subr.mxu0 0.0
    %489 = vmatpush1.msra.mxu0 %v461
    %490 = vmatprep.subr.mxu0 0.0
    %491 = vmatpush1.msra.mxu0 %v462
    %492 = vmatprep.subr.mxu0 0.0
    %493 = vmatpush1.msra.mxu0 %v463
    %494 = vmatprep.subr.mxu0 0.0
    %495 = vmatpush1.msra.mxu0 %v464
    %496 = vmatprep.subr.mxu0 0.0
    %497 = vmatpush1.msra.mxu0 %v465
    %498 = vmatprep.subr.mxu0 0.0
    %499 = vmatpush1.msra.mxu0 0.0
    %500 = vmatprep.subr.mxu0 0.0
    %501 = vmatpush1.msra.mxu0 0.0
    %502 = vmatprep.subr.mxu0 0.0
    %503 = vmatpush1.msra.mxu0 0.0
    %504 = vmatprep.subr.mxu0 0.0
    %505 = vmatpush1.msra.mxu0 0.0
    %506 = vmatprep.subr.mxu0 0.0
    %507 = vmatpush1.msra.mxu0 0.0
    %508 = vmatprep.subr.mxu0 0.0
    %509 = vmatpush1.msra.mxu0 0.0
    %510 = vmatprep.subr.mxu0 0.0
    %511 = vmatpush1.msra.mxu0 0.0
    %512 = vmatprep.subr.mxu0 0.0
    %513 = vmatpush1.msra.mxu0 0.0
    %514 = vmatprep.subr.mxu0 0.0
    %515 = vmatpush1.msra.mxu0 0.0
    %516 = vmatprep.subr.mxu0 0.0
    %517 = vmatpush1.msra.mxu0 0.0
    %518 = vmatprep.subr.mxu0 0.0
    %519 = vmatpush1.msra.mxu0 0.0
    %520 = vmatprep.subr.mxu0 0.0
    %521 = vmatpush1.msra.mxu0 0.0
    %522 = vmatprep.subr.mxu0 0.0
    %523 = vmatpush1.msra.mxu0 0.0
    %524 = vmatprep.subr.mxu0 0.0
    %525 = vmatpush1.msra.mxu0 0.0
    %526 = vmatprep.subr.mxu0 0.0
    %527 = vmatpush1.msra.mxu0 0.0
    %528 = vmatprep.subr.mxu0 0.0
    %529 = vmatpush1.msra.mxu0 0.0
    %530 = vmatprep.mubr.f32.mxu0 0.0
    %531 = vmatmul.mubr.f32.gmra.mrb[0].mxu0 %v449
    %v532 = vpop.f32.mrb[0].mxu0
    %v533 = vadd.f32 0.0, %v532
    %v534 = vpop.f32.mrb[0].mxu0
    %535 = vdwg.mxu0
    %v536 = vadd.f32 %v252, %v533
    %v537 = vtanh.pop %v536
    %v538 = vsub.f32 1.0, %v447
    %v539 = vmul.f32 %v538, %v537
    %v540 = vmul.f32 %v446, %v25
    %v541 = vadd.f32 %v539, %v540
    %542 = vst [vmem:[#allocation2] sm:$0xff] %v541
    // Predicated region
    $region26: #{dgm_layer.1} parent=1 // pred_check
      _
    $region27: #{dgm_layer.1} parent=1 // pred_check_branch
      %544 = sbr.rel (0) target = $region29
    $region28: #{dgm_layer.1} parent=1 // pred_region
      %s546 = ssub.s32 128, 128
      %547 = vsyncadd [#allocation3], %s546
      %s549 = sshll.u32 [#allocation2], 4
      %s550 = int_to_ptr.vmem [resolvable:$true] %s549
      %552 = dma.vmem_to_hbm [thread:$0]  %s550, 128, %s6, [#allocation3]
    $region29: #{dgm_layer.1} parent=1 // pred_fallthru
      _
    // Predicated region
    $region30: #{dgm_layer.1} parent=1 // pred_check
      _
    $region31: #{dgm_layer.1} parent=1 // pred_check_branch
      %554 = sbr.rel (0) target = $region33
    $region32: #{dgm_layer.1} parent=1 // pred_region
      %555 = dma.done [#allocation3], 128
    $region33: #{dgm_layer.1} parent=1 // pred_fallthru
      _
    %556 = vsyncpa [#allocation3], 1

</llo_original>
